<compile_context>
chip_gen: v5e
topology: v5e:2x2
jax: 0.10.0
libtpu: 0.0.40
codegen_flags: <defaults>
</compile_context>

<pallas_src>
import functools

import jax
import jax.numpy as jnp
from jax.experimental import pallas as pl
from jax.experimental.pallas import tpu as pltpu

_LANE = 128  # lane width: last dim of every block padded to this


def _round_up(x, m):
    return ((x + m - 1) // m) * m


def _sublane_multiple(dtype):
    # Rows packed per sublane: f32 -> 8, bf16 -> 16, int8/fp8 -> 32.
    return max(8, 32 // jnp.dtype(dtype).itemsize)


def _pick_batch_tile(b_sub):
    """Choose (tile_m, b_pad).  b_sub is already sublane-aligned."""
    if b_sub <= 128:
        return b_sub, b_sub
    candidates = [512, 384, 256, 128]
    if b_sub <= 512:
        candidates.append(b_sub)  # exact single tile, zero padded rows
    best_key, best = None, None
    for t in candidates:
        b_pad = _round_up(b_sub, t)
        steps = b_pad // t
        # Prefer: minimal zero-row padding, then >=2 grid steps (so v7x's two
        # TensorCores can shard the parallel batch axis), then a bigger tile
        # (amortizes ~0.35us per grid step).
        key = (b_pad - b_sub, 0 if steps >= 2 else 1, -t)
        if best_key is None or key < best_key:
            best_key, best = key, (t, b_pad)
    return best


def _fused_mlp_kernel(*refs, n_layers):
    """refs = (x_ref, w1_ref, b1_ref, ..., wN_ref, bN_ref, o_ref).

    Chains all Linear (+ ReLU between layers) ops in one trace; intermediate
    activations never leave VMEM/vregs.
    """
    x_ref = refs[0]
    o_ref = refs[-1]

    h = x_ref[...]
    for layer in range(n_layers):
        w_ref = refs[1 + 2 * layer]
        b_ref = refs[2 + 2 * layer]
        # MXU matmul in the weights' (compute) dtype with f32 accumulation.
        h = jnp.dot(h.astype(w_ref.dtype), w_ref[...],
                    preferred_element_type=jnp.float32)
        # Bias add (+ ReLU between layers) stays f32 on the VPU.
        h = h + b_ref[...]
        if layer < n_layers - 1:  # no ReLU after the last Linear
            h = jnp.maximum(h, 0.0)
    o_ref[...] = h.astype(o_ref.dtype)


def prepare_params(params, compute_dtype=jnp.float32):
    """Pad every Linear's weight/bias to lane multiples ONCE (outside the
    per-call path) and cast the weights to the MXU compute dtype.

    params: list of (w_t [d_in, d_out] f32, b [1, d_out] f32) per Linear,
            where w_t is the transpose of the PyTorch weight (y = x @ w_t + b).
    Returns: list of (w_pad [d_in_p, d_out_p] compute_dtype,
                      b_pad [1, d_out_p] f32).
    """
    prepared = []
    for w_t, b in params:
        din, dout = w_t.shape
        din_p, dout_p = _round_up(din, _LANE), _round_up(dout, _LANE)
        w_p = jnp.pad(w_t, ((0, din_p - din), (0, dout_p - dout)))
        w_p = w_p.astype(compute_dtype)
        b_p = jnp.pad(jnp.asarray(b, jnp.float32).reshape(1, -1),
                      ((0, 0), (0, dout_p - dout)))
        prepared.append((w_p, b_p))
    return prepared


def mlp_forward(x, prepared_params, *, out_dim=None, slice_output=True):
    """Fused forward pass.

    x:               [B, d_in] float32
    prepared_params: output of prepare_params()
    Returns [B, out_dim] f32, or the padded [b_pad, d_out_pad] slab (padded
    entries are exactly 0) when slice_output=False.
    """
    B, d_in = x.shape
    n_layers = len(prepared_params)
    compute_dtype = prepared_params[0][0].dtype
    out_dtype = jnp.float32

    dims_pad = [prepared_params[0][0].shape[0]] + [
        w.shape[1] for w, _ in prepared_params
    ]
    assert d_in <= dims_pad[0]
    if out_dim is None:
        out_dim = dims_pad[-1]

    sub = _sublane_multiple(compute_dtype)
    b_sub = _round_up(B, sub)
    tile_m, b_pad = _pick_batch_tile(b_sub)

    # Per-call work is on the (small) activations only: pad + cast to MXU dtype.
    x_pad = jnp.pad(x, ((0, b_pad - B), (0, dims_pad[0] - d_in)))
    x_pad = x_pad.astype(compute_dtype)

    flat_inputs = [x_pad]
    in_specs = [pl.BlockSpec((tile_m, dims_pad[0]), lambda i: (i, 0))]
    for w_p, b_p in prepared_params:
        flat_inputs.extend([w_p, b_p])
        # Constant index_map -> block never changes across grid steps; keep it
        # VMEM-resident with a SINGLE buffer (default pipelining would hold 2).
        in_specs.append(pl.BlockSpec(w_p.shape, lambda i: (0, 0),
                                     pipeline_mode=pl.Buffered(1)))
        in_specs.append(pl.BlockSpec(b_p.shape, lambda i: (0, 0),
                                     pipeline_mode=pl.Buffered(1)))

    out_spec = pl.BlockSpec((tile_m, dims_pad[-1]), lambda i: (i, 0))

    # Real VMEM footprint: resident (single-buffered) weights/biases +
    # double-buffered activation-in and output tiles, with headroom.
    resident = sum(w.size * w.dtype.itemsize + b.size * b.dtype.itemsize
                   for w, b in prepared_params)
    streamed = (2 * tile_m * dims_pad[0] * jnp.dtype(compute_dtype).itemsize
                + 2 * tile_m * dims_pad[-1] * jnp.dtype(out_dtype).itemsize)
    vmem_limit = int((resident + streamed) * 1.25) + (2 << 20)
    vmem_limit = min(max(vmem_limit, 32 << 20), 128 << 20)
    # TODO(synk): if hidden dims ever outgrow resident VMEM (esp. v7x 64 MiB),
    # add a K-reduction grid axis ("arbitrary") with a pl.when-init accumulator
    # instead of shrinking the batch tile.

    flops = 2 * b_pad * sum(w.shape[0] * w.shape[1] for w, _ in prepared_params)
    bytes_accessed = (x_pad.size * x_pad.dtype.itemsize + resident
                      + b_pad * dims_pad[-1] * jnp.dtype(out_dtype).itemsize)

    kernel = functools.partial(_fused_mlp_kernel, n_layers=n_layers)

    out_pad = pl.pallas_call(
        kernel,
        out_shape=jax.ShapeDtypeStruct((b_pad, dims_pad[-1]), out_dtype),
        grid=(b_pad // tile_m,),
        in_specs=in_specs,
        out_specs=out_spec,
        compiler_params=pltpu.CompilerParams(
            dimension_semantics=("parallel",),  # batch blocks are independent
            vmem_limit_bytes=vmem_limit,
        ),
        cost_estimate=pl.CostEstimate(
            flops=flops, transcendentals=0, bytes_accessed=bytes_accessed),
    )(*flat_inputs)

    if not slice_output:
        return out_pad
    return out_pad[:B, :out_dim]


def init_mlp_params(units_per_layer, key):
    """Deterministic PyTorch-style (Kaiming-uniform) init for each Linear."""
    params = []
    for layer_i in range(len(units_per_layer) - 1):
        fan_in = units_per_layer[layer_i]
        fan_out = units_per_layer[layer_i + 1]
        key, kw, kb = jax.random.split(key, 3)
        bound = 1.0 / jnp.sqrt(jnp.float32(fan_in))
        # Stored already transposed: [in, out]
        w_t = jax.random.uniform(
            kw, (fan_in, fan_out), jnp.float32, minval=-bound, maxval=bound)
        b = jax.random.uniform(
            kb, (1, fan_out), jnp.float32, minval=-bound, maxval=bound)
        params.append((w_t, b))
    return params


if __name__ == "__main__":
    units_per_layer = [32, 64, 48, 16]  # 3 Linear layers, ReLU after first two
    batch = 8

    key = jax.random.PRNGKey(0)
    key, kx = jax.random.split(key)
    features = jax.random.normal(kx, (batch, units_per_layer[0]), jnp.float32)
    params = init_mlp_params(units_per_layer, key)

    # Pure-JAX reference (unpadded math).
    ref = features
    for i, (w_t, b) in enumerate(params):
        ref = ref @ w_t + b
        if i < len(params) - 1:
            ref = jnp.maximum(ref, 0.0)

    fwd = jax.jit(functools.partial(mlp_forward, out_dim=units_per_layer[-1]))

    # f32 weights: exact match with the reference.
    prepared_f32 = prepare_params(params, jnp.float32)   # padded ONCE, reused
    out = fwd(features, prepared_f32)
    jax.block_until_ready(out)
    assert out.shape == (batch, units_per_layer[-1])
    assert jnp.allclose(out, ref, atol=1e-5, rtol=1e-5)

    # bf16 MXU operands (f32 accumulation): the VMEM / MXU-throughput lever
    # for v6e/v7x; verified against the f32 reference at bf16 tolerance.
    prepared_bf16 = prepare_params(params, jnp.bfloat16)
    out_bf16 = fwd(features, prepared_bf16)
    jax.block_until_ready(out_bf16)
    assert out_bf16.shape == (batch, units_per_layer[-1])
    assert jnp.allclose(out_bf16, ref, atol=5e-2, rtol=5e-2)

    print("KERNEL_OK")
</pallas_src>

<mosaic_0001>
module attributes {stable_mosaic.version = 11 : i64} {
  func.func @_fused_mlp_kernel(%arg0: i32, %arg1: memref<8x128xf32, #tpu.memory_space<vmem>>, %arg2: memref<128x128xf32, #tpu.memory_space<vmem>>, %arg3: memref<1x128xf32, #tpu.memory_space<vmem>>, %arg4: memref<128x128xf32, #tpu.memory_space<vmem>>, %arg5: memref<1x128xf32, #tpu.memory_space<vmem>>, %arg6: memref<128x128xf32, #tpu.memory_space<vmem>>, %arg7: memref<1x128xf32, #tpu.memory_space<vmem>>, %arg8: memref<8x128xf32, #tpu.memory_space<vmem>>) attributes {dimension_semantics = [#tpu.dimension_semantics<parallel>], iteration_bounds = array<i64: 1>, scalar_prefetch = 0 : i64, scratch_operands = 0 : i64, tpu.core_type = #tpu.core_type<tc>, window_params = [{transform_indices = @transform_0, window_bounds = array<i64: 8, 128>}, {pipeline_mode = #tpu.pipeline_mode<synchronous>, transform_indices = @transform_1, window_bounds = array<i64: 128, 128>}, {pipeline_mode = #tpu.pipeline_mode<synchronous>, transform_indices = @transform_2, window_bounds = array<i64: 1, 128>}, {pipeline_mode = #tpu.pipeline_mode<synchronous>, transform_indices = @transform_3, window_bounds = array<i64: 128, 128>}, {pipeline_mode = #tpu.pipeline_mode<synchronous>, transform_indices = @transform_4, window_bounds = array<i64: 1, 128>}, {pipeline_mode = #tpu.pipeline_mode<synchronous>, transform_indices = @transform_5, window_bounds = array<i64: 128, 128>}, {pipeline_mode = #tpu.pipeline_mode<synchronous>, transform_indices = @transform_6, window_bounds = array<i64: 1, 128>}, {transform_indices = @transform_7, window_bounds = array<i64: 8, 128>}]} {
    %c0 = arith.constant 0 : index
    %c0_0 = arith.constant 0 : index
    %0 = vector.load %arg1[%c0, %c0_0] : memref<8x128xf32, #tpu.memory_space<vmem>>, vector<8x128xf32>
    %c0_1 = arith.constant 0 : index
    %c0_2 = arith.constant 0 : index
    %1 = vector.load %arg2[%c0_1, %c0_2] : memref<128x128xf32, #tpu.memory_space<vmem>>, vector<128x128xf32>
    %cst = arith.constant dense<0.000000e+00> : vector<8x128xf32>
    %2 = tpu.matmul %0, %1, %cst {dimension_numbers = #tpu.dot_dimension_numbers<[1], [0], [0], [1], [0, 0, 1, 1], [], []>} : vector<8x128xf32>, vector<128x128xf32>, vector<8x128xf32> -> vector<8x128xf32>
    %c0_3 = arith.constant 0 : index
    %c0_4 = arith.constant 0 : index
    %3 = vector.load %arg3[%c0_3, %c0_4] : memref<1x128xf32, #tpu.memory_space<vmem>>, vector<1x128xf32>
    %4 = vector.broadcast %3 : vector<1x128xf32> to vector<8x128xf32>
    %5 = arith.addf %2, %4 : vector<8x128xf32>
    %cst_5 = arith.constant 0.000000e+00 : f32
    %6 = vector.broadcast %cst_5 : f32 to vector<8x128xf32>
    %7 = arith.maximumf %5, %6 : vector<8x128xf32>
    %c0_6 = arith.constant 0 : index
    %c0_7 = arith.constant 0 : index
    %8 = vector.load %arg4[%c0_6, %c0_7] : memref<128x128xf32, #tpu.memory_space<vmem>>, vector<128x128xf32>
    %cst_8 = arith.constant dense<0.000000e+00> : vector<8x128xf32>
    %9 = tpu.matmul %7, %8, %cst_8 {dimension_numbers = #tpu.dot_dimension_numbers<[1], [0], [0], [1], [0, 0, 1, 1], [], []>} : vector<8x128xf32>, vector<128x128xf32>, vector<8x128xf32> -> vector<8x128xf32>
    %c0_9 = arith.constant 0 : index
    %c0_10 = arith.constant 0 : index
    %10 = vector.load %arg5[%c0_9, %c0_10] : memref<1x128xf32, #tpu.memory_space<vmem>>, vector<1x128xf32>
    %11 = vector.broadcast %10 : vector<1x128xf32> to vector<8x128xf32>
    %12 = arith.addf %9, %11 : vector<8x128xf32>
    %cst_11 = arith.constant 0.000000e+00 : f32
    %13 = vector.broadcast %cst_11 : f32 to vector<8x128xf32>
    %14 = arith.maximumf %12, %13 : vector<8x128xf32>
    %c0_12 = arith.constant 0 : index
    %c0_13 = arith.constant 0 : index
    %15 = vector.load %arg6[%c0_12, %c0_13] : memref<128x128xf32, #tpu.memory_space<vmem>>, vector<128x128xf32>
    %cst_14 = arith.constant dense<0.000000e+00> : vector<8x128xf32>
    %16 = tpu.matmul %14, %15, %cst_14 {dimension_numbers = #tpu.dot_dimension_numbers<[1], [0], [0], [1], [0, 0, 1, 1], [], []>} : vector<8x128xf32>, vector<128x128xf32>, vector<8x128xf32> -> vector<8x128xf32>
    %c0_15 = arith.constant 0 : index
    %c0_16 = arith.constant 0 : index
    %17 = vector.load %arg7[%c0_15, %c0_16] : memref<1x128xf32, #tpu.memory_space<vmem>>, vector<1x128xf32>
    %18 = vector.broadcast %17 : vector<1x128xf32> to vector<8x128xf32>
    %19 = arith.addf %16, %18 : vector<8x128xf32>
    %c0_17 = arith.constant 0 : index
    %c0_18 = arith.constant 0 : index
    %20 = vector.load %arg8[%c0_17, %c0_18] : memref<8x128xf32, #tpu.memory_space<vmem>>, vector<8x128xf32>
    tpu.vector_store %arg8[%c0_17, %c0_18], %19 {strides = array<i32>} : memref<8x128xf32, #tpu.memory_space<vmem>>, vector<8x128xf32>,
    return
  }
  func.func @transform_0(%arg0: i32) -> (i32, i32) {
    %c0_i32 = arith.constant 0 : i32
    %c0_i32_0 = arith.constant 0 : i32
    return %arg0, %c0_i32 : i32, i32
  }
  func.func @transform_1(%arg0: i32) -> (i32, i32) {
    %c0_i32 = arith.constant 0 : i32
    %c0_i32_0 = arith.constant 0 : i32
    %c0_i32_1 = arith.constant 0 : i32
    return %c0_i32, %c0_i32_0 : i32, i32
  }
  func.func @transform_2(%arg0: i32) -> (i32, i32) {
    %c0_i32 = arith.constant 0 : i32
    %c0_i32_0 = arith.constant 0 : i32
    %c0_i32_1 = arith.constant 0 : i32
    return %c0_i32, %c0_i32_0 : i32, i32
  }
  func.func @transform_3(%arg0: i32) -> (i32, i32) {
    %c0_i32 = arith.constant 0 : i32
    %c0_i32_0 = arith.constant 0 : i32
    %c0_i32_1 = arith.constant 0 : i32
    return %c0_i32, %c0_i32_0 : i32, i32
  }
  func.func @transform_4(%arg0: i32) -> (i32, i32) {
    %c0_i32 = arith.constant 0 : i32
    %c0_i32_0 = arith.constant 0 : i32
    %c0_i32_1 = arith.constant 0 : i32
    return %c0_i32, %c0_i32_0 : i32, i32
  }
  func.func @transform_5(%arg0: i32) -> (i32, i32) {
    %c0_i32 = arith.constant 0 : i32
    %c0_i32_0 = arith.constant 0 : i32
    %c0_i32_1 = arith.constant 0 : i32
    return %c0_i32, %c0_i32_0 : i32, i32
  }
  func.func @transform_6(%arg0: i32) -> (i32, i32) {
    %c0_i32 = arith.constant 0 : i32
    %c0_i32_0 = arith.constant 0 : i32
    %c0_i32_1 = arith.constant 0 : i32
    return %c0_i32, %c0_i32_0 : i32, i32
  }
  func.func @transform_7(%arg0: i32) -> (i32, i32) {
    %c0_i32 = arith.constant 0 : i32
    %c0_i32_0 = arith.constant 0 : i32
    return %arg0, %c0_i32 : i32, i32
  }
}

</mosaic_0001>

<llo_original>
// kernel: mlp_forward.1
$region0: #{mlp_forward.1}
  #allocation0 [shape = 'u32[]', space=smem, size = 0x4, offset = 0x4, fixed_abs, tag = 'smem constant byte address 0x4 - core index']
  #allocation1 [shape = 'u32[72,128]{1,0:T(1,128)}', space=vmem, size = 0x9000, scoped, tag = 'internal scratch']
  %s0 = inlined_call_operand.vmem [shape: f32[8,128], index: 0, kind: input, shape index: {}]
  %s1 = inlined_call_operand.hbm [shape: f32[128,128], index: 1, kind: input, shape index: {}]
  %s2 = inlined_call_operand.vmem [shape: f32[1,128], index: 2, kind: input, shape index: {}]
  %s3 = inlined_call_operand.hbm [shape: f32[128,128], index: 3, kind: input, shape index: {}]
  %s4 = inlined_call_operand.vmem [shape: f32[1,128], index: 4, kind: input, shape index: {}]
  %s5 = inlined_call_operand.hbm [shape: f32[128,128], index: 5, kind: input, shape index: {}]
  %s6 = inlined_call_operand.vmem [shape: f32[1,128], index: 6, kind: input, shape index: {}]
  %s7 = inlined_call_operand.hbm [shape: f32[8,128], index: 7, kind: output, shape index: {}]
  %s8 = sld [smem:[#allocation0]]
  $region50: #{mlp_forward.1} parent=0
    _
  %s10 = ssub.s32 1, %s8
  %s11 = scalar_select 0, %s10, %s8
  $region1: #{mlp_forward.1} parent=0
    #allocation2 [shape = 'u8[65536]{0}', space=vmem, size = 0x10000, scoped, tag = 'input window, operand 1, single buffered']
    #allocation3 [shape = 's32[1]{0}', space=sflag, size = 0x4, scoped, tag = 'scoped memory for mlp_forward.1']
    #allocation4 [shape = 's32[1]{0}', space=sflag, size = 0x4, scoped, tag = 'scoped memory for mlp_forward.1']
    #allocation5 [shape = 'u8[65536]{0}', space=vmem, size = 0x10000, scoped, tag = 'input window, operand 3, single buffered']
    #allocation6 [shape = 's32[1]{0}', space=sflag, size = 0x4, scoped, tag = 'scoped memory for mlp_forward.1']
    #allocation7 [shape = 'u8[65536]{0}', space=vmem, size = 0x10000, scoped, tag = 'input window, operand 5, single buffered']
    #allocation8 [shape = 'u8[4096]{0}', space=vmem, size = 0x1000, scoped, tag = 'output window, operand 0, single buffered']
    %12 = vsyncpa [#allocation3], 0
    %13 = vsyncpa [#allocation6], 0
    %14 = vsyncpa [#allocation4], 0
    // Predicated region
    $region2: #{mlp_forward.1} parent=1 // pred_check
      _
    $region3: #{mlp_forward.1} parent=1 // pred_check_branch
      %16 = sbr.rel (0) target = $region5
    $region4: #{mlp_forward.1} parent=1 // pred_region
      _
    $region5: #{mlp_forward.1} parent=1 // pred_fallthru
      _
    // Predicated region
    $region6: #{mlp_forward.1} parent=1 // pred_check
      _
    $region7: #{mlp_forward.1} parent=1 // pred_check_branch
      %18 = sbr.rel (0) target = $region9
    $region8: #{mlp_forward.1} parent=1 // pred_region
      %20 = vsyncadd [#allocation3], 0
      %s21 = sshll.u32 %s1, 4
      %s22 = int_to_ptr.hbm [resolvable:$true] %s21
      %s23 = sshll.u32 [#allocation2], 4
      %s24 = int_to_ptr.vmem [resolvable:$true] %s23
      %29 = dma.hbm_to_vmem [thread:$0]  %s22, 2048, %s24, [#allocation3], 128, 128, 8
    $region9: #{mlp_forward.1} parent=1 // pred_fallthru
      _
    // Predicated region
    $region10: #{mlp_forward.1} parent=1 // pred_check
      _
    $region11: #{mlp_forward.1} parent=1 // pred_check_branch
      %31 = sbr.rel (0) target = $region13
    $region12: #{mlp_forward.1} parent=1 // pred_region
      _
    $region13: #{mlp_forward.1} parent=1 // pred_fallthru
      _
    // Predicated region
    $region14: #{mlp_forward.1} parent=1 // pred_check
      _
    $region15: #{mlp_forward.1} parent=1 // pred_check_branch
      %33 = sbr.rel (0) target = $region17
    $region16: #{mlp_forward.1} parent=1 // pred_region
      %35 = vsyncadd [#allocation6], 0
      %s36 = sshll.u32 %s3, 4
      %s37 = int_to_ptr.hbm [resolvable:$true] %s36
      %s38 = sshll.u32 [#allocation5], 4
      %s39 = int_to_ptr.vmem [resolvable:$true] %s38
      %44 = dma.hbm_to_vmem [thread:$0]  %s37, 2048, %s39, [#allocation6], 128, 128, 8
    $region17: #{mlp_forward.1} parent=1 // pred_fallthru
      _
    // Predicated region
    $region18: #{mlp_forward.1} parent=1 // pred_check
      _
    $region19: #{mlp_forward.1} parent=1 // pred_check_branch
      %46 = sbr.rel (0) target = $region21
    $region20: #{mlp_forward.1} parent=1 // pred_region
      _
    $region21: #{mlp_forward.1} parent=1 // pred_fallthru
      _
    // Predicated region
    $region22: #{mlp_forward.1} parent=1 // pred_check
      _
    $region23: #{mlp_forward.1} parent=1 // pred_check_branch
      %48 = sbr.rel (0) target = $region25
    $region24: #{mlp_forward.1} parent=1 // pred_region
      %50 = vsyncadd [#allocation6], 0
      %s51 = sshll.u32 %s5, 4
      %s52 = int_to_ptr.hbm [resolvable:$true] %s51
      %s53 = sshll.u32 [#allocation7], 4
      %s54 = int_to_ptr.vmem [resolvable:$true] %s53
      %59 = dma.hbm_to_vmem [thread:$0]  %s52, 2048, %s54, [#allocation6], 128, 128, 8
    $region25: #{mlp_forward.1} parent=1 // pred_fallthru
      _
    // Predicated region
    $region26: #{mlp_forward.1} parent=1 // pred_check
      _
    $region27: #{mlp_forward.1} parent=1 // pred_check_branch
      %61 = sbr.rel (0) target = $region29
    $region28: #{mlp_forward.1} parent=1 // pred_region
      _
    $region29: #{mlp_forward.1} parent=1 // pred_fallthru
      _
    // Predicated region
    $region30: #{mlp_forward.1} parent=1 // pred_check
      _
    $region31: #{mlp_forward.1} parent=1 // pred_check_branch
      %63 = sbr.rel (0) target = $region33
    $region32: #{mlp_forward.1} parent=1 // pred_region
      %65 = dma.done [#allocation3], 2048
    $region33: #{mlp_forward.1} parent=1 // pred_fallthru
      _
    // Predicated region
    $region34: #{mlp_forward.1} parent=1 // pred_check
      _
    $region35: #{mlp_forward.1} parent=1 // pred_check_branch
      %67 = sbr.rel (0) target = $region37
    $region36: #{mlp_forward.1} parent=1 // pred_region
      %69 = dma.done [#allocation6], 2048
    $region37: #{mlp_forward.1} parent=1 // pred_fallthru
      _
    // Predicated region
    $region38: #{mlp_forward.1} parent=1 // pred_check
      _
    $region39: #{mlp_forward.1} parent=1 // pred_check_branch
      %71 = sbr.rel (0) target = $region41
    $region40: #{mlp_forward.1} parent=1 // pred_region
      %73 = dma.done [#allocation6], 2048
    $region41: #{mlp_forward.1} parent=1 // pred_fallthru
      _
    %v74 = vld [vmem:[%s0] sm:$0xff]
    %v75 = vld [vmem:[#allocation2] sm:$0xff]
    %v76 = vld [vmem:[#allocation2 + $0x8] sm:$0xff]
    %v77 = vld [vmem:[#allocation2 + $0x10] sm:$0xff]
    %v78 = vld [vmem:[#allocation2 + $0x18] sm:$0xff]
    %v79 = vld [vmem:[#allocation2 + $0x20] sm:$0xff]
    %v80 = vld [vmem:[#allocation2 + $0x28] sm:$0xff]
    %v81 = vld [vmem:[#allocation2 + $0x30] sm:$0xff]
    %v82 = vld [vmem:[#allocation2 + $0x38] sm:$0xff]
    %v83 = vld [vmem:[#allocation2 + $0x40] sm:$0xff]
    %v84 = vld [vmem:[#allocation2 + $0x48] sm:$0xff]
    %v85 = vld [vmem:[#allocation2 + $0x50] sm:$0xff]
    %v86 = vld [vmem:[#allocation2 + $0x58] sm:$0xff]
    %v87 = vld [vmem:[#allocation2 + $0x60] sm:$0xff]
    %v88 = vld [vmem:[#allocation2 + $0x68] sm:$0xff]
    %v89 = vld [vmem:[#allocation2 + $0x70] sm:$0xff]
    %v90 = vld [vmem:[#allocation2 + $0x78] sm:$0xff]
    %v91 = vld [vmem:[%s2] sm:$0x1]
    %v93 = vperm.slane %v91, 0
    %95 = vmatpush.msra.mxu0 %v90
    %96 = vmatpush.msra.mxu0 %v89
    %97 = vmatpush.msra.mxu0 %v88
    %98 = vmatpush.msra.mxu0 %v87
    %99 = vmatpush.msra.mxu0 %v86
    %100 = vmatpush.msra.mxu0 %v85
    %101 = vmatpush.msra.mxu0 %v84
    %102 = vmatpush.msra.mxu0 %v83
    %103 = vmatpush.msra.mxu0 %v82
    %104 = vmatpush.msra.mxu0 %v81
    %105 = vmatpush.msra.mxu0 %v80
    %106 = vmatpush.msra.mxu0 %v79
    %107 = vmatpush.msra.mxu0 %v78
    %108 = vmatpush.msra.mxu0 %v77
    %109 = vmatpush.msra.mxu0 %v76
    %110 = vmatpush.msra.mxu0 %v75
    %111 = vmatmul.f32.gmra.mxu0 %v74
    %v112 = vpop.f32.mrf.mxu0
    %v113 = vadd.f32 %v93, %v112
    %114 = vdwg.mxu0
    %v115 = vmax.f32 %v113, 0.0
    %v116 = vld [vmem:[#allocation5] sm:$0xff]
    %v117 = vld [vmem:[#allocation5 + $0x8] sm:$0xff]
    %v118 = vld [vmem:[#allocation5 + $0x10] sm:$0xff]
    %v119 = vld [vmem:[#allocation5 + $0x18] sm:$0xff]
    %v120 = vld [vmem:[#allocation5 + $0x20] sm:$0xff]
    %v121 = vld [vmem:[#allocation5 + $0x28] sm:$0xff]
    %v122 = vld [vmem:[#allocation5 + $0x30] sm:$0xff]
    %v123 = vld [vmem:[#allocation5 + $0x38] sm:$0xff]
    %v124 = vld [vmem:[#allocation5 + $0x40] sm:$0xff]
    %v125 = vld [vmem:[#allocation5 + $0x48] sm:$0xff]
    %v126 = vld [vmem:[#allocation5 + $0x50] sm:$0xff]
    %v127 = vld [vmem:[#allocation5 + $0x58] sm:$0xff]
    %v128 = vld [vmem:[#allocation5 + $0x60] sm:$0xff]
    %v129 = vld [vmem:[#allocation5 + $0x68] sm:$0xff]
    %v130 = vld [vmem:[#allocation5 + $0x70] sm:$0xff]
    %v131 = vld [vmem:[#allocation5 + $0x78] sm:$0xff]
    %v132 = vld [vmem:[%s4] sm:$0x1]
    %v134 = vperm.slane %v132, 0
    %136 = vmatpush.msra.mxu0 %v131
    %137 = vmatpush.msra.mxu0 %v130
    %138 = vmatpush.msra.mxu0 %v129
    %139 = vmatpush.msra.mxu0 %v128
    %140 = vmatpush.msra.mxu0 %v127
    %141 = vmatpush.msra.mxu0 %v126
    %142 = vmatpush.msra.mxu0 %v125
    %143 = vmatpush.msra.mxu0 %v124
    %144 = vmatpush.msra.mxu0 %v123
    %145 = vmatpush.msra.mxu0 %v122
    %146 = vmatpush.msra.mxu0 %v121
    %147 = vmatpush.msra.mxu0 %v120
    %148 = vmatpush.msra.mxu0 %v119
    %149 = vmatpush.msra.mxu0 %v118
    %150 = vmatpush.msra.mxu0 %v117
    %151 = vmatpush.msra.mxu0 %v116
    %152 = vmatmul.f32.gmra.mxu0 %v115
    %v153 = vpop.f32.mrf.mxu0
    %v154 = vadd.f32 %v134, %v153
    %155 = vdwg.mxu0
    %v156 = vmax.f32 %v154, 0.0
    %v157 = vld [vmem:[#allocation7] sm:$0xff]
    %v158 = vld [vmem:[#allocation7 + $0x8] sm:$0xff]
    %v159 = vld [vmem:[#allocation7 + $0x10] sm:$0xff]
    %v160 = vld [vmem:[#allocation7 + $0x18] sm:$0xff]
    %v161 = vld [vmem:[#allocation7 + $0x20] sm:$0xff]
    %v162 = vld [vmem:[#allocation7 + $0x28] sm:$0xff]
    %v163 = vld [vmem:[#allocation7 + $0x30] sm:$0xff]
    %v164 = vld [vmem:[#allocation7 + $0x38] sm:$0xff]
    %v165 = vld [vmem:[#allocation7 + $0x40] sm:$0xff]
    %v166 = vld [vmem:[#allocation7 + $0x48] sm:$0xff]
    %v167 = vld [vmem:[#allocation7 + $0x50] sm:$0xff]
    %v168 = vld [vmem:[#allocation7 + $0x58] sm:$0xff]
    %v169 = vld [vmem:[#allocation7 + $0x60] sm:$0xff]
    %v170 = vld [vmem:[#allocation7 + $0x68] sm:$0xff]
    %v171 = vld [vmem:[#allocation7 + $0x70] sm:$0xff]
    %v172 = vld [vmem:[#allocation7 + $0x78] sm:$0xff]
    %v173 = vld [vmem:[%s6] sm:$0x1]
    %v175 = vperm.slane %v173, 0
    %177 = vmatpush.msra.mxu0 %v172
    %178 = vmatpush.msra.mxu0 %v171
    %179 = vmatpush.msra.mxu0 %v170
    %180 = vmatpush.msra.mxu0 %v169
    %181 = vmatpush.msra.mxu0 %v168
    %182 = vmatpush.msra.mxu0 %v167
    %183 = vmatpush.msra.mxu0 %v166
    %184 = vmatpush.msra.mxu0 %v165
    %185 = vmatpush.msra.mxu0 %v164
    %186 = vmatpush.msra.mxu0 %v163
    %187 = vmatpush.msra.mxu0 %v162
    %188 = vmatpush.msra.mxu0 %v161
    %189 = vmatpush.msra.mxu0 %v160
    %190 = vmatpush.msra.mxu0 %v159
    %191 = vmatpush.msra.mxu0 %v158
    %192 = vmatpush.msra.mxu0 %v157
    %193 = vmatmul.f32.gmra.mxu0 %v156
    %v194 = vpop.f32.mrf.mxu0
    %v195 = vadd.f32 %v175, %v194
    %196 = vdwg.mxu0
    %197 = vst [vmem:[#allocation8] sm:$0xff] %v195
    // Predicated region
    $region42: #{mlp_forward.1} parent=1 // pred_check
      _
    $region43: #{mlp_forward.1} parent=1 // pred_check_branch
      %199 = sbr.rel (0) target = $region45
    $region44: #{mlp_forward.1} parent=1 // pred_region
      %201 = vsyncadd [#allocation4], 0
      %s203 = sshll.u32 [#allocation8], 4
      %s204 = int_to_ptr.vmem [resolvable:$true] %s203
      %s205 = sshll.u32 %s7, 4
      %s206 = int_to_ptr.hbm [resolvable:$true] %s205
      %208 = dma.vmem_to_hbm [thread:$0]  %s204, 128, %s206, [#allocation4]
    $region45: #{mlp_forward.1} parent=1 // pred_fallthru
      _
    // Predicated region
    $region46: #{mlp_forward.1} parent=1 // pred_check
      _
    $region47: #{mlp_forward.1} parent=1 // pred_check_branch
      %210 = sbr.rel (0) target = $region49
    $region48: #{mlp_forward.1} parent=1 // pred_region
      %212 = dma.done [#allocation4], 128
    $region49: #{mlp_forward.1} parent=1 // pred_fallthru
      _
    %213 = vsyncpa [#allocation3], 1
    %214 = vsyncpa [#allocation6], 1
    %215 = vsyncpa [#allocation4], 1

</llo_original>
